<compile_context>
chip_gen: v6e
topology: v6e:2x2x1
jax: 0.10.0
libtpu: 0.0.40
codegen_flags: <defaults>
</compile_context>

<pallas_src>
import functools

import jax
import jax.numpy as jnp
from jax.experimental import pallas as pl
from jax.experimental.pallas import tpu as pltpu

HIDDEN = 256
OUT_PAD = 128                      # MXU lane width used for the fc3 matmul / packing
_VMEM_BUDGET = 24 * 1024 * 1024    # per-step working-set budget (fits every generation)


def critic_kernel(x_ref, w1_ref, b1_ref, w2_ref, b2_ref, w3_ref, b3_ref, out_ref):
    cdt = w1_ref.dtype                 # compute dtype for MXU operands / sigmoid
    tile = x_ref.shape[0]              # batch rows in this block
    rows = out_ref.shape[0]            # tile // 128 packed output rows

    # state streams as f32; cast to the compute dtype in-kernel (hidden VPU work).
    x = x_ref[...].astype(cdt)

    # fc1 + SiLU  (f32 accumulation; bias add and h*sigmoid(h) in f32, sigmoid in cdt)
    h1 = jnp.dot(x, w1_ref[...], preferred_element_type=jnp.float32) + b1_ref[...]
    h1 = h1 * jax.nn.sigmoid(h1.astype(cdt)).astype(jnp.float32)

    # fc2 + SiLU
    h2 = jnp.dot(h1.astype(cdt), w2_ref[...], preferred_element_type=jnp.float32) + b2_ref[...]
    h2 = h2 * jax.nn.sigmoid(h2.astype(cdt)).astype(jnp.float32)

    # fc3: w3 is lane-broadcast, so every column of g holds the per-row value:
    #   g[m, c] = value[m] for all c.
    g = jnp.dot(h2.astype(cdt), w3_ref[...], preferred_element_type=jnp.float32)

    # Pack into a lane-dense (rows, 128) block: out[r, c] = value[r*128 + c].
    # 1) keep only column (m mod 128) of row m, 2) sum each 128-row block with a
    #    tiny 0/1 selection matmul (rows x tile x 128 MACs, negligible).
    m_sub = jax.lax.broadcasted_iota(jnp.int32, (tile, OUT_PAD), 0)
    lane = jax.lax.broadcasted_iota(jnp.int32, (tile, OUT_PAD), 1)
    gm = g * ((m_sub & (OUT_PAD - 1)) == lane).astype(jnp.float32)

    r_sub = jax.lax.broadcasted_iota(jnp.int32, (rows, tile), 0)
    m_lane = jax.lax.broadcasted_iota(jnp.int32, (rows, tile), 1)
    sel = ((m_lane >> 7) == r_sub).astype(jnp.float32)      # 7 = log2(128)

    packed = jnp.dot(sel, gm, preferred_element_type=jnp.float32)
    out_ref[...] = packed + b3_ref[...]


def _round_up(x, m):
    return (x + m - 1) // m * m


def _working_set_bytes(tile_b, state_dim, w_bytes):
    """Rough per-grid-step VMEM working set (double-buffered I/O + resident weights)."""
    state_io = 2 * tile_b * state_dim * 4                      # f32 input tile, 2 buffers
    out_io = 2 * (tile_b // 128) * OUT_PAD * 4                 # packed output, 2 buffers
    weights = 2 * (state_dim * HIDDEN + HIDDEN * HIDDEN + HIDDEN * OUT_PAD) * w_bytes
    biases = 2 * (2 * HIDDEN + OUT_PAD) * 4 * 8
    act = tile_b * (state_dim * w_bytes                        # compute-dtype copy of x
                    + 2 * HIDDEN * (4 + w_bytes)               # h1 / h2 (+ casts)
                    + 2 * OUT_PAD * 4 + OUT_PAD // 2)          # g, masked g, masks
    return state_io + out_io + weights + biases + act


def _select_tiling(B, state_dim, w_bytes, tile_b_target):
    """Pick (tile_b, padded_B).  Multi-step grids use tile_b multiples of 1024 so the
    packed (tile_b//128, 128) output block stays (8,128)-aligned."""
    target = max(1024, (int(tile_b_target) // 1024) * 1024)
    while target > 1024 and _working_set_bytes(target, state_dim, w_bytes) > _VMEM_BUDGET:
        target -= 1024

    b128 = _round_up(B, 128)
    if b128 <= target:
        if b128 >= 2048 and b128 % 2048 == 0:
            return b128 // 2, b128          # >=2 grid steps -> both v7x TensorCores
        return b128, b128                   # single tile
    for cand in range(target, 0, -1024):    # prefer a tile that divides B (no pad copy)
        if B % cand == 0:
            return cand, B
    return target, _round_up(B, target)


@functools.partial(jax.jit, static_argnames=("tile_b", "compute_dtype"))
def critic_forward(state, params, *, tile_b=2048, compute_dtype=jnp.bfloat16):
    """Fused Critic forward.  state: (B, state_dim) f32 -> value: (B, 1) f32."""
    w1, b1, w2, b2, w3, b3 = params
    B, state_dim = state.shape
    w_bytes = jnp.dtype(compute_dtype).itemsize

    tile, b_pad = _select_tiling(B, state_dim, w_bytes, tile_b)
    if b_pad != B:   # only when no divisor tile exists / tiny batches
        state = jnp.pad(state, ((0, b_pad - B), (0, 0)))
    grid = (b_pad // tile,)
    rows = tile // 128

    # Weights stream in the compute dtype; biases stay f32.  fc3's column is
    # broadcast across 128 lanes so the kernel's MXU output is lane-dense.
    w1c = w1.astype(compute_dtype)
    w2c = w2.astype(compute_dtype)
    w3c = jnp.broadcast_to(w3, (HIDDEN, OUT_PAD)).astype(compute_dtype)
    b1c = b1.astype(jnp.float32)
    b2c = b2.astype(jnp.float32)
    b3c = jnp.broadcast_to(b3, (1, OUT_PAD)).astype(jnp.float32)

    flops = 2 * b_pad * (state_dim * HIDDEN + HIDDEN * HIDDEN + 2 * HIDDEN * OUT_PAD)
    bytes_accessed = (b_pad * state_dim * 4
                      + (w1c.size + w2c.size + w3c.size) * w_bytes
                      + (b1c.size + b2c.size + b3c.size) * 4
                      + b_pad * 4)
    vmem_limit = int(min(max(2 * _working_set_bytes(tile, state_dim, w_bytes),
                             32 * 1024 * 1024),
                         48 * 1024 * 1024))

    resident = lambda shape: pl.BlockSpec(shape, lambda i: (0, 0))

    out = pl.pallas_call(
        critic_kernel,
        out_shape=jax.ShapeDtypeStruct((b_pad // 128, OUT_PAD), jnp.float32),
        grid=grid,
        in_specs=[
            pl.BlockSpec((tile, state_dim), lambda i: (i, 0)),   # state tile (walks batch)
            resident(w1c.shape), resident(b1c.shape),            # fc1 (VMEM-resident)
            resident(w2c.shape), resident(b2c.shape),            # fc2 (VMEM-resident)
            resident(w3c.shape), resident(b3c.shape),            # fc3 (VMEM-resident)
        ],
        out_specs=pl.BlockSpec((rows, OUT_PAD), lambda i: (i, 0)),
        compiler_params=pltpu.CompilerParams(
            dimension_semantics=("parallel",),
            vmem_limit_bytes=vmem_limit),
        cost_estimate=pl.CostEstimate(
            flops=int(flops),
            transcendentals=int(2 * b_pad * HIDDEN),
            bytes_accessed=int(bytes_accessed)),
    )(state, w1c, b1c, w2c, b2c, w3c, b3c)

    # out[r, c] == value[r*128 + c]; undo the packing (4 B/row, negligible).
    return out.reshape(-1, 1)[:B]


def init_params(key, state_dim):
    """Torch-default init (uniform +-1/sqrt(fan_in)); fc3 zeroed as in __init__."""
    k1, k2, k3, k4 = jax.random.split(key, 4)
    lim1 = 1.0 / jnp.sqrt(state_dim)
    lim2 = 1.0 / jnp.sqrt(HIDDEN)
    w1 = jax.random.uniform(k1, (state_dim, HIDDEN), jnp.float32, -lim1, lim1)
    b1 = jax.random.uniform(k2, (1, HIDDEN), jnp.float32, -lim1, lim1)
    w2 = jax.random.uniform(k3, (HIDDEN, HIDDEN), jnp.float32, -lim2, lim2)
    b2 = jax.random.uniform(k4, (1, HIDDEN), jnp.float32, -lim2, lim2)
    w3 = jnp.zeros((HIDDEN, 1), jnp.float32)   # nn.init.zeros_(fc3.weight)
    b3 = jnp.zeros((1, 1), jnp.float32)        # nn.init.zeros_(fc3.bias)
    return (w1, b1, w2, b2, w3, b3)


def critic_ref(state, params):
    """Pure-JAX reference (HIGHEST matmul precision) for correctness checking."""
    w1, b1, w2, b2, w3, b3 = params
    hp = jax.lax.Precision.HIGHEST
    h1 = jax.nn.silu(jnp.dot(state, w1, precision=hp) + b1)
    h2 = jax.nn.silu(jnp.dot(h1, w2, precision=hp) + b2)
    return jnp.dot(h2, w3, precision=hp) + b3


if __name__ == "__main__":
    key = jax.random.PRNGKey(0)
    kx, kp, kw3, kb3 = jax.random.split(key, 4)

    B, STATE_DIM = 8, 32
    state = jax.random.normal(kx, (B, STATE_DIM), jnp.float32)

    # 1) Torch-faithful init (fc3 zeroed) -> output must be exactly zero.
    params0 = init_params(kp, STATE_DIM)
    v0 = critic_forward(state, params0)
    jax.block_until_ready(v0)
    assert v0.shape == (B, 1)
    assert jnp.allclose(v0, jnp.zeros_like(v0))

    # 2) Non-degenerate fc3 so fc1/fc2/SiLU/fc3 + value packing are exercised.
    w1, b1, w2, b2, _, _ = params0
    w3 = 0.05 * jax.random.normal(kw3, (HIDDEN, 1), jnp.float32)
    b3 = 0.05 * jax.random.normal(kb3, (1, 1), jnp.float32)
    params = (w1, b1, w2, b2, w3, b3)
    ref = critic_ref(state, params)

    v_bf16 = critic_forward(state, params)                        # default: bf16 weights
    jax.block_until_ready(v_bf16)
    assert v_bf16.shape == (B, 1)
    assert jnp.allclose(v_bf16, ref, atol=5e-2, rtol=5e-2)

    v_f32 = critic_forward(state, params, compute_dtype=jnp.float32)
    jax.block_until_ready(v_f32)
    assert jnp.allclose(v_f32, ref, atol=1e-2, rtol=1e-2)

    # 3) Batch not a multiple of 128 (row padding + packed-output un-packing).
    B2 = 300
    state2 = jax.random.normal(kx, (B2, STATE_DIM), jnp.float32)
    ref2 = critic_ref(state2, params)
    v2 = critic_forward(state2, params)
    jax.block_until_ready(v2)
    assert v2.shape == (B2, 1)
    assert jnp.allclose(v2, ref2, atol=5e-2, rtol=5e-2)

    # 4) Multi-step grid (3 x 1024-row tiles, divisor tile -> no pad copy).
    B3 = 3072
    state3 = jax.random.normal(kx, (B3, STATE_DIM), jnp.float32)
    ref3 = critic_ref(state3, params)
    v3 = critic_forward(state3, params)
    jax.block_until_ready(v3)
    assert v3.shape == (B3, 1)
    assert jnp.allclose(v3, ref3, atol=5e-2, rtol=5e-2)

    print("KERNEL_OK")
</pallas_src>

<mosaic_0001>
module attributes {stable_mosaic.version = 11 : i64} {
  func.func @critic_kernel(%arg0: i32, %arg1: memref<128x32xf32, #tpu.memory_space<vmem>>, %arg2: memref<32x256xbf16, #tpu.memory_space<vmem>>, %arg3: memref<1x256xf32, #tpu.memory_space<vmem>>, %arg4: memref<256x256xbf16, #tpu.memory_space<vmem>>, %arg5: memref<1x256xf32, #tpu.memory_space<vmem>>, %arg6: memref<256x128xbf16, #tpu.memory_space<vmem>>, %arg7: memref<1x128xf32, #tpu.memory_space<vmem>>, %arg8: memref<1x128xf32, #tpu.memory_space<vmem>>) attributes {dimension_semantics = [#tpu.dimension_semantics<parallel>], iteration_bounds = array<i64: 1>, scalar_prefetch = 0 : i64, scratch_operands = 0 : i64, tpu.core_type = #tpu.core_type<tc>, window_params = [{transform_indices = @transform_0, window_bounds = array<i64: 128, 32>}, {pipeline_mode = #tpu.pipeline_mode<synchronous>, transform_indices = @transform_1, window_bounds = array<i64: 32, 256>}, {pipeline_mode = #tpu.pipeline_mode<synchronous>, transform_indices = @transform_2, window_bounds = array<i64: 1, 256>}, {pipeline_mode = #tpu.pipeline_mode<synchronous>, transform_indices = @transform_3, window_bounds = array<i64: 256, 256>}, {pipeline_mode = #tpu.pipeline_mode<synchronous>, transform_indices = @transform_4, window_bounds = array<i64: 1, 256>}, {pipeline_mode = #tpu.pipeline_mode<synchronous>, transform_indices = @transform_5, window_bounds = array<i64: 256, 128>}, {pipeline_mode = #tpu.pipeline_mode<synchronous>, transform_indices = @transform_6, window_bounds = array<i64: 1, 128>}, {transform_indices = @transform_7, window_bounds = array<i64: 1, 128>}]} {
    %c0 = arith.constant 0 : index
    %c0_0 = arith.constant 0 : index
    %0 = vector.load %arg1[%c0, %c0_0] : memref<128x32xf32, #tpu.memory_space<vmem>>, vector<128x32xf32>
    %1 = arith.truncf %0 : vector<128x32xf32> to vector<128x32xbf16>
    %c0_1 = arith.constant 0 : index
    %c0_2 = arith.constant 0 : index
    %2 = vector.load %arg2[%c0_1, %c0_2] : memref<32x256xbf16, #tpu.memory_space<vmem>>, vector<32x256xbf16>
    %cst = arith.constant dense<0.000000e+00> : vector<128x256xf32>
    %3 = tpu.matmul %1, %2, %cst {dimension_numbers = #tpu.dot_dimension_numbers<[1], [0], [0], [1], [0, 0, 1, 1], [], []>} : vector<128x32xbf16>, vector<32x256xbf16>, vector<128x256xf32> -> vector<128x256xf32>
    %c0_3 = arith.constant 0 : index
    %c0_4 = arith.constant 0 : index
    %4 = vector.load %arg3[%c0_3, %c0_4] : memref<1x256xf32, #tpu.memory_space<vmem>>, vector<1x256xf32>
    %5 = vector.broadcast %4 : vector<1x256xf32> to vector<128x256xf32>
    %6 = arith.addf %3, %5 : vector<128x256xf32>
    %7 = arith.truncf %6 : vector<128x256xf32> to vector<128x256xbf16>
    %8 = arith.negf %7 : vector<128x256xbf16>
    %9 = math.exp %8 : vector<128x256xbf16>
    %cst_5 = arith.constant 1.000000e+00 : bf16
    %10 = vector.broadcast %cst_5 : bf16 to vector<128x256xbf16>
    %11 = arith.addf %10, %9 : vector<128x256xbf16>
    %12 = arith.divf %10, %11 : vector<128x256xbf16>
    %13 = arith.extf %12 : vector<128x256xbf16> to vector<128x256xf32>
    %14 = arith.mulf %6, %13 : vector<128x256xf32>
    %15 = arith.truncf %14 : vector<128x256xf32> to vector<128x256xbf16>
    %c0_6 = arith.constant 0 : index
    %c0_7 = arith.constant 0 : index
    %16 = vector.load %arg4[%c0_6, %c0_7] : memref<256x256xbf16, #tpu.memory_space<vmem>>, vector<256x256xbf16>
    %cst_8 = arith.constant dense<0.000000e+00> : vector<128x256xf32>
    %17 = tpu.matmul %15, %16, %cst_8 {dimension_numbers = #tpu.dot_dimension_numbers<[1], [0], [0], [1], [0, 0, 1, 1], [], []>} : vector<128x256xbf16>, vector<256x256xbf16>, vector<128x256xf32> -> vector<128x256xf32>
    %c0_9 = arith.constant 0 : index
    %c0_10 = arith.constant 0 : index
    %18 = vector.load %arg5[%c0_9, %c0_10] : memref<1x256xf32, #tpu.memory_space<vmem>>, vector<1x256xf32>
    %19 = vector.broadcast %18 : vector<1x256xf32> to vector<128x256xf32>
    %20 = arith.addf %17, %19 : vector<128x256xf32>
    %21 = arith.truncf %20 : vector<128x256xf32> to vector<128x256xbf16>
    %22 = arith.negf %21 : vector<128x256xbf16>
    %23 = math.exp %22 : vector<128x256xbf16>
    %cst_11 = arith.constant 1.000000e+00 : bf16
    %24 = vector.broadcast %cst_11 : bf16 to vector<128x256xbf16>
    %25 = arith.addf %24, %23 : vector<128x256xbf16>
    %26 = arith.divf %24, %25 : vector<128x256xbf16>
    %27 = arith.extf %26 : vector<128x256xbf16> to vector<128x256xf32>
    %28 = arith.mulf %20, %27 : vector<128x256xf32>
    %29 = arith.truncf %28 : vector<128x256xf32> to vector<128x256xbf16>
    %c0_12 = arith.constant 0 : index
    %c0_13 = arith.constant 0 : index
    %30 = vector.load %arg6[%c0_12, %c0_13] : memref<256x128xbf16, #tpu.memory_space<vmem>>, vector<256x128xbf16>
    %cst_14 = arith.constant dense<0.000000e+00> : vector<128x128xf32>
    %31 = tpu.matmul %29, %30, %cst_14 {dimension_numbers = #tpu.dot_dimension_numbers<[1], [0], [0], [1], [0, 0, 1, 1], [], []>} : vector<128x256xbf16>, vector<256x128xbf16>, vector<128x128xf32> -> vector<128x128xf32>
    %32 = tpu.iota {dimensions = array<i32: 0>} : vector<128x128xi32>
    %33 = tpu.iota {dimensions = array<i32: 1>} : vector<128x128xi32>
    %c127_i32 = arith.constant 127 : i32
    %34 = vector.broadcast %c127_i32 : i32 to vector<128x128xi32>
    %35 = arith.andi %32, %34 : vector<128x128xi32>
    %36 = arith.cmpi eq, %35, %33 : vector<128x128xi32>
    %37 = arith.extui %36 : vector<128x128xi1> to vector<128x128xi32>
    %38 = arith.sitofp %37 : vector<128x128xi32> to vector<128x128xf32>
    %39 = arith.mulf %31, %38 : vector<128x128xf32>
    %40 = tpu.iota {dimensions = array<i32: 0>} : vector<1x128xi32>
    %41 = tpu.iota {dimensions = array<i32: 1>} : vector<1x128xi32>
    %c7_i32 = arith.constant 7 : i32
    %42 = vector.broadcast %c7_i32 : i32 to vector<1x128xi32>
    %43 = arith.shrsi %41, %42 : vector<1x128xi32>
    %44 = arith.cmpi eq, %43, %40 : vector<1x128xi32>
    %45 = arith.extui %44 : vector<1x128xi1> to vector<1x128xi32>
    %46 = arith.sitofp %45 : vector<1x128xi32> to vector<1x128xf32>
    %cst_15 = arith.constant dense<0.000000e+00> : vector<1x128xf32>
    %47 = tpu.matmul %46, %39, %cst_15 {dimension_numbers = #tpu.dot_dimension_numbers<[1], [0], [0], [1], [0, 0, 1, 1], [], []>} : vector<1x128xf32>, vector<128x128xf32>, vector<1x128xf32> -> vector<1x128xf32>
    %c0_16 = arith.constant 0 : index
    %c0_17 = arith.constant 0 : index
    %48 = vector.load %arg7[%c0_16, %c0_17] : memref<1x128xf32, #tpu.memory_space<vmem>>, vector<1x128xf32>
    %49 = arith.addf %47, %48 : vector<1x128xf32>
    %c0_18 = arith.constant 0 : index
    %c0_19 = arith.constant 0 : index
    %50 = vector.load %arg8[%c0_18, %c0_19] : memref<1x128xf32, #tpu.memory_space<vmem>>, vector<1x128xf32>
    tpu.vector_store %arg8[%c0_18, %c0_19], %49 {strides = array<i32>} : memref<1x128xf32, #tpu.memory_space<vmem>>, vector<1x128xf32>,
    return
  }
  func.func @transform_0(%arg0: i32) -> (i32, i32) {
    %c0_i32 = arith.constant 0 : i32
    %c0_i32_0 = arith.constant 0 : i32
    return %arg0, %c0_i32 : i32, i32
  }
  func.func @transform_1(%arg0: i32) -> (i32, i32) {
    %c0_i32 = arith.constant 0 : i32
    %c0_i32_0 = arith.constant 0 : i32
    %c0_i32_1 = arith.constant 0 : i32
    return %c0_i32, %c0_i32_0 : i32, i32
  }
  func.func @transform_2(%arg0: i32) -> (i32, i32) {
    %c0_i32 = arith.constant 0 : i32
    %c0_i32_0 = arith.constant 0 : i32
    %c0_i32_1 = arith.constant 0 : i32
    return %c0_i32, %c0_i32_0 : i32, i32
  }
  func.func @transform_3(%arg0: i32) -> (i32, i32) {
    %c0_i32 = arith.constant 0 : i32
    %c0_i32_0 = arith.constant 0 : i32
    %c0_i32_1 = arith.constant 0 : i32
    return %c0_i32, %c0_i32_0 : i32, i32
  }
  func.func @transform_4(%arg0: i32) -> (i32, i32) {
    %c0_i32 = arith.constant 0 : i32
    %c0_i32_0 = arith.constant 0 : i32
    %c0_i32_1 = arith.constant 0 : i32
    return %c0_i32, %c0_i32_0 : i32, i32
  }
  func.func @transform_5(%arg0: i32) -> (i32, i32) {
    %c0_i32 = arith.constant 0 : i32
    %c0_i32_0 = arith.constant 0 : i32
    %c0_i32_1 = arith.constant 0 : i32
    return %c0_i32, %c0_i32_0 : i32, i32
  }
  func.func @transform_6(%arg0: i32) -> (i32, i32) {
    %c0_i32 = arith.constant 0 : i32
    %c0_i32_0 = arith.constant 0 : i32
    %c0_i32_1 = arith.constant 0 : i32
    return %c0_i32, %c0_i32_0 : i32, i32
  }
  func.func @transform_7(%arg0: i32) -> (i32, i32) {
    %c0_i32 = arith.constant 0 : i32
    %c0_i32_0 = arith.constant 0 : i32
    return %arg0, %c0_i32 : i32, i32
  }
}

</mosaic_0001>

<llo_original>
// kernel: critic_forward.1
$region0: #{critic_forward.1}
  #allocation0 [shape = 'u32[]', space=smem, size = 0x4, offset = 0x4, fixed_abs, tag = 'smem constant byte address 0x4 - core index']
  #allocation1 [shape = 'u32[144,128]{1,0:T(1,128)}', space=vmem, size = 0x12000, scoped, tag = 'internal scratch']
  %s0 = inlined_call_operand.vmem [shape: f32[128,32], index: 0, kind: input, shape index: {}]
  %s1 = inlined_call_operand.vmem [shape: bf16[32,256], index: 1, kind: input, shape index: {}]
  %s2 = inlined_call_operand.vmem [shape: f32[1,256], index: 2, kind: input, shape index: {}]
  %s3 = inlined_call_operand.vmem [shape: bf16[256,256], index: 3, kind: input, shape index: {}]
  %s4 = inlined_call_operand.vmem [shape: f32[1,256], index: 4, kind: input, shape index: {}]
  %s5 = inlined_call_operand.vmem [shape: bf16[256,128], index: 5, kind: input, shape index: {}]
  %s6 = inlined_call_operand.vmem [shape: f32[1,128], index: 6, kind: input, shape index: {}]
  %s7 = inlined_call_operand.vmem [shape: f32[1,128], index: 7, kind: output, shape index: {}]
  %s8 = sld [smem:[#allocation0]]
  $region38: #{critic_forward.1} parent=0
    _
  %s10 = ssub.s32 1, %s8
  %s11 = scalar_select 0, %s10, %s8
  // Predicated region
  $region2: #{critic_forward.1} parent=0 // pred_check
    _
  $region3: #{critic_forward.1} parent=0 // pred_check_branch
    %13 = sbr.rel (0) target = $region5
  $region4: #{critic_forward.1} parent=0 // pred_region
    _
  $region5: #{critic_forward.1} parent=0 // pred_fallthru
    _
  // Predicated region
  $region6: #{critic_forward.1} parent=0 // pred_check
    _
  $region7: #{critic_forward.1} parent=0 // pred_check_branch
    %15 = sbr.rel (0) target = $region9
  $region8: #{critic_forward.1} parent=0 // pred_region
    _
  $region9: #{critic_forward.1} parent=0 // pred_fallthru
    _
  // Predicated region
  $region10: #{critic_forward.1} parent=0 // pred_check
    _
  $region11: #{critic_forward.1} parent=0 // pred_check_branch
    %17 = sbr.rel (0) target = $region13
  $region12: #{critic_forward.1} parent=0 // pred_region
    _
  $region13: #{critic_forward.1} parent=0 // pred_fallthru
    _
  // Predicated region
  $region14: #{critic_forward.1} parent=0 // pred_check
    _
  $region15: #{critic_forward.1} parent=0 // pred_check_branch
    %19 = sbr.rel (0) target = $region17
  $region16: #{critic_forward.1} parent=0 // pred_region
    _
  $region17: #{critic_forward.1} parent=0 // pred_fallthru
    _
  // Predicated region
  $region18: #{critic_forward.1} parent=0 // pred_check
    _
  $region19: #{critic_forward.1} parent=0 // pred_check_branch
    %21 = sbr.rel (0) target = $region21
  $region20: #{critic_forward.1} parent=0 // pred_region
    _
  $region21: #{critic_forward.1} parent=0 // pred_fallthru
    _
  // Predicated region
  $region22: #{critic_forward.1} parent=0 // pred_check
    _
  $region23: #{critic_forward.1} parent=0 // pred_check_branch
    %23 = sbr.rel (0) target = $region25
  $region24: #{critic_forward.1} parent=0 // pred_region
    _
  $region25: #{critic_forward.1} parent=0 // pred_fallthru
    _
  // Predicated region
  $region26: #{critic_forward.1} parent=0 // pred_check
    _
  $region27: #{critic_forward.1} parent=0 // pred_check_branch
    %25 = sbr.rel (0) target = $region29
  $region28: #{critic_forward.1} parent=0 // pred_region
    _
  $region29: #{critic_forward.1} parent=0 // pred_fallthru
    _
  %v28 = vld [vmem:[%s0] sm:$0xff]
  %v29 = vld [vmem:[%s0 + $0x8] sm:$0xff]
  %v30 = vld [vmem:[%s0 + $0x10] sm:$0xff]
  %v31 = vld [vmem:[%s0 + $0x18] sm:$0xff]
  %v32 = vld [vmem:[%s0 + $0x20] sm:$0xff]
  %v33 = vld [vmem:[%s0 + $0x28] sm:$0xff]
  %v34 = vld [vmem:[%s0 + $0x30] sm:$0xff]
  %v35 = vld [vmem:[%s0 + $0x38] sm:$0xff]
  %v36 = vld [vmem:[%s0 + $0x40] sm:$0xff]
  %v37 = vld [vmem:[%s0 + $0x48] sm:$0xff]
  %v38 = vld [vmem:[%s0 + $0x50] sm:$0xff]
  %v39 = vld [vmem:[%s0 + $0x58] sm:$0xff]
  %v40 = vld [vmem:[%s0 + $0x60] sm:$0xff]
  %v41 = vld [vmem:[%s0 + $0x68] sm:$0xff]
  %v42 = vld [vmem:[%s0 + $0x70] sm:$0xff]
  %v43 = vld [vmem:[%s0 + $0x78] sm:$0xff]
  %v44 = vpack.c.bf16 %v29, %v28
  %v45 = vpack.c.bf16 %v31, %v30
  %v46 = vpack.c.bf16 %v33, %v32
  %v47 = vpack.c.bf16 %v35, %v34
  %v48 = vpack.c.bf16 %v37, %v36
  %v49 = vpack.c.bf16 %v39, %v38
  %v50 = vpack.c.bf16 %v41, %v40
  %v51 = vpack.c.bf16 %v43, %v42
  %v52 = vld [vmem:[%s1] sm:$0xff]
  %v53 = vld [vmem:[%s1 + $0x8] sm:$0xff]
  %v54 = vld [vmem:[%s1 + $0x10] sm:$0xff]
  %v55 = vld [vmem:[%s1 + $0x18] sm:$0xff]
  %v56 = vld [vmem:[%s2] sm:$0x3]
  %v58 = vlaneseq
  %v59 = vshrl.u32 %v58, 7
  %v60 = vsub.s32 0, %v59
  %v61 = vrot.slane %v56, %v60
  %v62 = vlaneseq
  %v63 = vshrl.u32 %v62, 7
  %v64 = vsub.s32 1, %v63
  %v65 = vrot.slane %v56, %v64
  %v72 = vunpack.c.l.b16 %v52
  %v73 = vunpack.c.h.b16 %v52
  %v74 = vunpack.c.l.b16 %v53
  %v75 = vunpack.c.h.b16 %v53
  %v76 = vunpack.c.l.b16 %v54
  %v77 = vunpack.c.h.b16 %v54
  %v78 = vunpack.c.l.b16 %v55
  %v79 = vunpack.c.h.b16 %v55
  %v80 = vpack.c.b16 %v74, %v72
  %v81 = vpack.c.b16 %v75, %v73
  %v82 = vpack.c.b16 %v78, %v76
  %v83 = vpack.c.b16 %v79, %v77
  %vm88 = vcmask 261120
  %v90 = vsel %vm88, %v44, 0
  %v93 = vsel %vm88, %v45, 0
  %v96 = vsel %vm88, %v46, 0
  %v99 = vsel %vm88, %v47, 0
  %v102 = vsel %vm88, %v48, 0
  %v105 = vsel %vm88, %v49, 0
  %v108 = vsel %vm88, %v50, 0
  %v111 = vsel %vm88, %v51, 0
  %113 = vmatprep.subr.bf16.mxu0 0
  %114 = vmatpush1.bf16.msra.mxu0 0
  %115 = vmatprep.subr.bf16.mxu0 0
  %116 = vmatpush1.bf16.msra.mxu0 0
  %117 = vmatprep.subr.bf16.mxu0 0
  %118 = vmatpush1.bf16.msra.mxu0 0
  %119 = vmatprep.subr.bf16.mxu0 0
  %120 = vmatpush1.bf16.msra.mxu0 0
  %121 = vmatprep.subr.bf16.mxu0 0
  %122 = vmatpush1.bf16.msra.mxu0 0
  %123 = vmatprep.subr.bf16.mxu0 0
  %124 = vmatpush1.bf16.msra.mxu0 0
  %125 = vmatprep.subr.bf16.mxu0 %v83
  %126 = vmatpush1.bf16.msra.mxu0 %v82
  %127 = vmatprep.subr.bf16.mxu0 %v81
  %128 = vmatpush1.bf16.msra.mxu0 %v80
  %129 = vmatprep.subr.bf16.mxu0 0
  %130 = vmatpush2.bf16.msra.mxu0 0
  %131 = vmatprep.subr.bf16.mxu0 0
  %132 = vmatpush2.bf16.msra.mxu0 0
  %133 = vmatprep.subr.bf16.mxu0 0
  %134 = vmatpush2.bf16.msra.mxu0 0
  %135 = vmatprep.subr.bf16.mxu0 0
  %136 = vmatpush2.bf16.msra.mxu0 0
  %137 = vmatprep.subr.bf16.mxu0 0
  %138 = vmatpush2.bf16.msra.mxu0 0
  %139 = vmatprep.subr.bf16.mxu0 0
  %140 = vmatpush2.bf16.msra.mxu0 0
  %141 = vmatprep.subr.bf16.mxu0 0
  %142 = vmatpush2.bf16.msra.mxu0 0
  %143 = vmatprep.subr.bf16.mxu0 0
  %144 = vmatpush2.bf16.msra.mxu0 0
  %145 = vmatprep.mubr.bf16.mxu0 0
  %146 = vmatmul.mubr.bf16.gmra.mxu0 %v90
  %v147 = vpop.f32.mrf.mxu0
  %v148 = vadd.f32 %v61, %v147
  %v149 = vpop.f32.mrf.mxu0
  %v150 = vadd.f32 %v65, %v149
  %v151 = vpop.f32.mrf.mxu0
  %v152 = vadd.f32 %v61, %v151
  %v153 = vpop.f32.mrf.mxu0
  %v154 = vadd.f32 %v65, %v153
  %155 = vmatprep.mubr.bf16.mxu0 0
  %156 = vmatmul.mubr.bf16.gmra.mxu0 %v93
  %v157 = vpop.f32.mrf.mxu0
  %v158 = vadd.f32 %v61, %v157
  %v159 = vpop.f32.mrf.mxu0
  %v160 = vadd.f32 %v65, %v159
  %v161 = vpop.f32.mrf.mxu0
  %v162 = vadd.f32 %v61, %v161
  %v163 = vpop.f32.mrf.mxu0
  %v164 = vadd.f32 %v65, %v163
  %165 = vmatprep.mubr.bf16.mxu0 0
  %166 = vmatmul.mubr.bf16.gmra.mxu0 %v96
  %v167 = vpop.f32.mrf.mxu0
  %v168 = vadd.f32 %v61, %v167
  %v169 = vpop.f32.mrf.mxu0
  %v170 = vadd.f32 %v65, %v169
  %v171 = vpop.f32.mrf.mxu0
  %v172 = vadd.f32 %v61, %v171
  %v173 = vpop.f32.mrf.mxu0
  %v174 = vadd.f32 %v65, %v173
  %175 = vmatprep.mubr.bf16.mxu0 0
  %176 = vmatmul.mubr.bf16.gmra.mxu0 %v99
  %v177 = vpop.f32.mrf.mxu0
  %v178 = vadd.f32 %v61, %v177
  %v179 = vpop.f32.mrf.mxu0
  %v180 = vadd.f32 %v65, %v179
  %v181 = vpop.f32.mrf.mxu0
  %v182 = vadd.f32 %v61, %v181
  %v183 = vpop.f32.mrf.mxu0
  %v184 = vadd.f32 %v65, %v183
  %185 = vmatprep.mubr.bf16.mxu0 0
  %186 = vmatmul.mubr.bf16.gmra.mxu0 %v102
  %v187 = vpop.f32.mrf.mxu0
  %v188 = vadd.f32 %v61, %v187
  %v189 = vpop.f32.mrf.mxu0
  %v190 = vadd.f32 %v65, %v189
  %v191 = vpop.f32.mrf.mxu0
  %v192 = vadd.f32 %v61, %v191
  %v193 = vpop.f32.mrf.mxu0
  %v194 = vadd.f32 %v65, %v193
  %195 = vmatprep.mubr.bf16.mxu0 0
  %196 = vmatmul.mubr.bf16.gmra.mxu0 %v105
  %v197 = vpop.f32.mrf.mxu0
  %v198 = vadd.f32 %v61, %v197
  %v199 = vpop.f32.mrf.mxu0
  %v200 = vadd.f32 %v65, %v199
  %v201 = vpop.f32.mrf.mxu0
  %v202 = vadd.f32 %v61, %v201
  %v203 = vpop.f32.mrf.mxu0
  %v204 = vadd.f32 %v65, %v203
  %205 = vmatprep.mubr.bf16.mxu0 0
  %206 = vmatmul.mubr.bf16.gmra.mxu0 %v108
  %v207 = vpop.f32.mrf.mxu0
  %v208 = vadd.f32 %v61, %v207
  %v209 = vpop.f32.mrf.mxu0
  %v210 = vadd.f32 %v65, %v209
  %v211 = vpop.f32.mrf.mxu0
  %v212 = vadd.f32 %v61, %v211
  %v213 = vpop.f32.mrf.mxu0
  %v214 = vadd.f32 %v65, %v213
  %215 = vmatprep.mubr.bf16.mxu0 0
  %216 = vmatmul.mubr.bf16.gmra.mxu0 %v111
  %v217 = vpop.f32.mrf.mxu0
  %v218 = vadd.f32 %v61, %v217
  %v219 = vpop.f32.mrf.mxu0
  %v220 = vadd.f32 %v65, %v219
  %v221 = vpop.f32.mrf.mxu0
  %v222 = vadd.f32 %v61, %v221
  %v223 = vpop.f32.mrf.mxu0
  %v224 = vadd.f32 %v65, %v223
  %225 = vdwg.mxu0
  %v226 = vpack.c.bf16 %v152, %v148
  %v227 = vpack.c.bf16 %v154, %v150
  %v228 = vpack.c.bf16 %v162, %v158
  %v229 = vpack.c.bf16 %v164, %v160
  %v230 = vpack.c.bf16 %v172, %v168
  %v231 = vpack.c.bf16 %v174, %v170
  %v232 = vpack.c.bf16 %v182, %v178
  %v233 = vpack.c.bf16 %v184, %v180
  %v234 = vpack.c.bf16 %v192, %v188
  %v235 = vpack.c.bf16 %v194, %v190
  %v236 = vpack.c.bf16 %v202, %v198
  %v237 = vpack.c.bf16 %v204, %v200
  %v238 = vpack.c.bf16 %v212, %v208
  %v239 = vpack.c.bf16 %v214, %v210
  %v240 = vpack.c.bf16 %v222, %v218
  %v241 = vpack.c.bf16 %v224, %v220
  %v242 = vxor.u32 %v226, 2147516416
  %v243 = vxor.u32 %v227, 2147516416
  %v244 = vxor.u32 %v228, 2147516416
  %v245 = vxor.u32 %v229, 2147516416
  %v246 = vxor.u32 %v230, 2147516416
  %v247 = vxor.u32 %v231, 2147516416
  %v248 = vxor.u32 %v232, 2147516416
  %v249 = vxor.u32 %v233, 2147516416
  %v250 = vxor.u32 %v234, 2147516416
  %v251 = vxor.u32 %v235, 2147516416
  %v252 = vxor.u32 %v236, 2147516416
  %v253 = vxor.u32 %v237, 2147516416
  %v254 = vxor.u32 %v238, 2147516416
  %v255 = vxor.u32 %v239, 2147516416
  %v256 = vxor.u32 %v240, 2147516416
  %v257 = vxor.u32 %v241, 2147516416
  %v259 = vmul.bf16 %v242, 1069105081
  %v260 = vpow.bf16.pop %v259
  %v262 = vmul.bf16 %v243, 1069105081
  %v263 = vpow.bf16.pop %v262
  %v265 = vmul.bf16 %v244, 1069105081
  %v266 = vpow.bf16.pop %v265
  %v268 = vmul.bf16 %v245, 1069105081
  %v269 = vpow.bf16.pop %v268
  %v271 = vmul.bf16 %v246, 1069105081
  %v272 = vpow.bf16.pop %v271
  %v274 = vmul.bf16 %v247, 1069105081
  %v275 = vpow.bf16.pop %v274
  %v277 = vmul.bf16 %v248, 1069105081
  %v278 = vpow.bf16.pop %v277
  %v280 = vmul.bf16 %v249, 1069105081
  %v281 = vpow.bf16.pop %v280
  %v283 = vmul.bf16 %v250, 1069105081
  %v284 = vpow.bf16.pop %v283
  %v286 = vmul.bf16 %v251, 1069105081
  %v287 = vpow.bf16.pop %v286
  %v289 = vmul.bf16 %v252, 1069105081
  %v290 = vpow.bf16.pop %v289
  %v292 = vmul.bf16 %v253, 1069105081
  %v293 = vpow.bf16.pop %v292
  %v295 = vmul.bf16 %v254, 1069105081
  %v296 = vpow.bf16.pop %v295
  %v298 = vmul.bf16 %v255, 1069105081
  %v299 = vpow.bf16.pop %v298
  %v301 = vmul.bf16 %v256, 1069105081
  %v302 = vpow.bf16.pop %v301
  %v304 = vmul.bf16 %v257, 1069105081
  %v305 = vpow.bf16.pop %v304
  %v306 = vadd.bf16 %v260, 1065369472
  %v307 = vadd.bf16 %v263, 1065369472
  %v308 = vadd.bf16 %v266, 1065369472
  %v309 = vadd.bf16 %v269, 1065369472
  %v310 = vadd.bf16 %v272, 1065369472
  %v311 = vadd.bf16 %v275, 1065369472
  %v312 = vadd.bf16 %v278, 1065369472
  %v313 = vadd.bf16 %v281, 1065369472
  %v314 = vadd.bf16 %v284, 1065369472
  %v315 = vadd.bf16 %v287, 1065369472
  %v316 = vadd.bf16 %v290, 1065369472
  %v317 = vadd.bf16 %v293, 1065369472
  %v318 = vadd.bf16 %v296, 1065369472
  %v319 = vadd.bf16 %v299, 1065369472
  %v320 = vadd.bf16 %v302, 1065369472
  %v321 = vadd.bf16 %v305, 1065369472
  %v322 = vrcp.bf16.pop %v306
  %v323 = vmul.bf16 1065369472, %v322
  %v324 = vrcp.bf16.pop %v307
  %v325 = vmul.bf16 1065369472, %v324
  %v326 = vrcp.bf16.pop %v308
  %v327 = vmul.bf16 1065369472, %v326
  %v328 = vrcp.bf16.pop %v309
  %v329 = vmul.bf16 1065369472, %v328
  %v330 = vrcp.bf16.pop %v310
  %v331 = vmul.bf16 1065369472, %v330
  %v332 = vrcp.bf16.pop %v311
  %v333 = vmul.bf16 1065369472, %v332
  %v334 = vrcp.bf16.pop %v312
  %v335 = vmul.bf16 1065369472, %v334
  %v336 = vrcp.bf16.pop %v313
  %v337 = vmul.bf16 1065369472, %v336
  %v338 = vrcp.bf16.pop %v314
  %v339 = vmul.bf16 1065369472, %v338
  %v340 = vrcp.bf16.pop %v315
  %v341 = vmul.bf16 1065369472, %v340
  %v342 = vrcp.bf16.pop %v316
  %v343 = vmul.bf16 1065369472, %v342
  %v344 = vrcp.bf16.pop %v317
  %v345 = vmul.bf16 1065369472, %v344
  %v346 = vrcp.bf16.pop %v318
  %v347 = vmul.bf16 1065369472, %v346
  %v348 = vrcp.bf16.pop %v319
  %v349 = vmul.bf16 1065369472, %v348
  %v350 = vrcp.bf16.pop %v320
  %v351 = vmul.bf16 1065369472, %v350
  %v352 = vrcp.bf16.pop %v321
  %v353 = vmul.bf16 1065369472, %v352
  %v354 = vunpack.c.l.bf16 %v323
  %v355 = vunpack.c.l.bf16 %v325
  %v356 = vunpack.c.h.bf16 %v323
  %v357 = vunpack.c.h.bf16 %v325
  %v358 = vunpack.c.l.bf16 %v327
  %v359 = vunpack.c.l.bf16 %v329
  %v360 = vunpack.c.h.bf16 %v327
  %v361 = vunpack.c.h.bf16 %v329
  %v362 = vunpack.c.l.bf16 %v331
  %v363 = vunpack.c.l.bf16 %v333
  %v364 = vunpack.c.h.bf16 %v331
  %v365 = vunpack.c.h.bf16 %v333
  %v366 = vunpack.c.l.bf16 %v335
  %v367 = vunpack.c.l.bf16 %v337
  %v368 = vunpack.c.h.bf16 %v335
  %v369 = vunpack.c.h.bf16 %v337
  %v370 = vunpack.c.l.bf16 %v339
  %v371 = vunpack.c.l.bf16 %v341
  %v372 = vunpack.c.h.bf16 %v339
  %v373 = vunpack.c.h.bf16 %v341
  %v374 = vunpack.c.l.bf16 %v343
  %v375 = vunpack.c.l.bf16 %v345
  %v376 = vunpack.c.h.bf16 %v343
  %v377 = vunpack.c.h.bf16 %v345
  %v378 = vunpack.c.l.bf16 %v347
  %v379 = vunpack.c.l.bf16 %v349
  %v380 = vunpack.c.h.bf16 %v347
  %v381 = vunpack.c.h.bf16 %v349
  %v382 = vunpack.c.l.bf16 %v351
  %v383 = vunpack.c.l.bf16 %v353
  %v384 = vunpack.c.h.bf16 %v351
  %v385 = vunpack.c.h.bf16 %v353
  %v386 = vmul.f32 %v148, %v354
  %v387 = vmul.f32 %v150, %v355
  %v388 = vmul.f32 %v152, %v356
  %v389 = vmul.f32 %v154, %v357
  %v390 = vmul.f32 %v158, %v358
  %v391 = vmul.f32 %v160, %v359
  %v392 = vmul.f32 %v162, %v360
  %v393 = vmul.f32 %v164, %v361
  %v394 = vmul.f32 %v168, %v362
  %v395 = vmul.f32 %v170, %v363
  %v396 = vmul.f32 %v172, %v364
  %v397 = vmul.f32 %v174, %v365
  %v398 = vmul.f32 %v178, %v366
  %v399 = vmul.f32 %v180, %v367
  %v400 = vmul.f32 %v182, %v368
  %v401 = vmul.f32 %v184, %v369
  %v402 = vmul.f32 %v188, %v370
  %v403 = vmul.f32 %v190, %v371
  %v404 = vmul.f32 %v192, %v372
  %v405 = vmul.f32 %v194, %v373
  %v406 = vmul.f32 %v198, %v374
  %v407 = vmul.f32 %v200, %v375
  %v408 = vmul.f32 %v202, %v376
  %v409 = vmul.f32 %v204, %v377
  %v410 = vmul.f32 %v208, %v378
  %v411 = vmul.f32 %v210, %v379
  %v412 = vmul.f32 %v212, %v380
  %v413 = vmul.f32 %v214, %v381
  %v414 = vmul.f32 %v218, %v382
  %v415 = vmul.f32 %v220, %v383
  %v416 = vmul.f32 %v222, %v384
  %v417 = vmul.f32 %v224, %v385
  %v418 = vpack.c.bf16 %v388, %v386
  %v419 = vpack.c.bf16 %v389, %v387
  %v420 = vpack.c.bf16 %v392, %v390
  %v421 = vpack.c.bf16 %v393, %v391
  %v422 = vpack.c.bf16 %v396, %v394
  %v423 = vpack.c.bf16 %v397, %v395
  %v424 = vpack.c.bf16 %v400, %v398
  %v425 = vpack.c.bf16 %v401, %v399
  %v426 = vpack.c.bf16 %v404, %v402
  %v427 = vpack.c.bf16 %v405, %v403
  %v428 = vpack.c.bf16 %v408, %v406
  %v429 = vpack.c.bf16 %v409, %v407
  %v430 = vpack.c.bf16 %v412, %v410
  %v431 = vpack.c.bf16 %v413, %v411
  %v432 = vpack.c.bf16 %v416, %v414
  %v433 = vpack.c.bf16 %v417, %v415
  %v434 = vld [vmem:[%s3] sm:$0xff]
  %v435 = vld [vmem:[%s3 + $0x8] sm:$0xff]
  %v436 = vld [vmem:[%s3 + $0x10] sm:$0xff]
  %v437 = vld [vmem:[%s3 + $0x18] sm:$0xff]
  %v438 = vld [vmem:[%s3 + $0x20] sm:$0xff]
  %v439 = vld [vmem:[%s3 + $0x28] sm:$0xff]
  %v440 = vld [vmem:[%s3 + $0x30] sm:$0xff]
  %v441 = vld [vmem:[%s3 + $0x38] sm:$0xff]
  %v442 = vld [vmem:[%s3 + $0x40] sm:$0xff]
  %v443 = vld [vmem:[%s3 + $0x48] sm:$0xff]
  %v444 = vld [vmem:[%s3 + $0x50] sm:$0xff]
  %v445 = vld [vmem:[%s3 + $0x58] sm:$0xff]
  %v446 = vld [vmem:[%s3 + $0x60] sm:$0xff]
  %v447 = vld [vmem:[%s3 + $0x68] sm:$0xff]
  %v448 = vld [vmem:[%s3 + $0x70] sm:$0xff]
  %v449 = vld [vmem:[%s3 + $0x78] sm:$0xff]
  %v450 = vld [vmem:[%s3 + $0x80] sm:$0xff]
  %v451 = vld [vmem:[%s3 + $0x88] sm:$0xff]
  %v452 = vld [vmem:[%s3 + $0x90] sm:$0xff]
  %v453 = vld [vmem:[%s3 + $0x98] sm:$0xff]
  %v454 = vld [vmem:[%s3 + $0xa0] sm:$0xff]
  %v455 = vld [vmem:[%s3 + $0xa8] sm:$0xff]
  %v456 = vld [vmem:[%s3 + $0xb0] sm:$0xff]
  %v457 = vld [vmem:[%s3 + $0xb8] sm:$0xff]
  %v458 = vld [vmem:[%s3 + $0xc0] sm:$0xff]
  %v459 = vld [vmem:[%s3 + $0xc8] sm:$0xff]
  %v460 = vld [vmem:[%s3 + $0xd0] sm:$0xff]
  %v461 = vld [vmem:[%s3 + $0xd8] sm:$0xff]
  %v462 = vld [vmem:[%s3 + $0xe0] sm:$0xff]
  %v463 = vld [vmem:[%s3 + $0xe8] sm:$0xff]
  %v464 = vld [vmem:[%s3 + $0xf0] sm:$0xff]
  %v465 = vld [vmem:[%s3 + $0xf8] sm:$0xff]
  %v466 = vld [vmem:[%s4] sm:$0x3]
  %v468 = vlaneseq
  %v469 = vshrl.u32 %v468, 7
  %v470 = vsub.s32 0, %v469
  %v471 = vrot.slane %v466, %v470
  %v472 = vlaneseq
  %v473 = vshrl.u32 %v472, 7
  %v474 = vsub.s32 1, %v473
  %v475 = vrot.slane %v466, %v474
  %v510 = vunpack.c.l.b16 %v434
  %v511 = vunpack.c.h.b16 %v434
  %v512 = vunpack.c.l.b16 %v435
  %v513 = vunpack.c.h.b16 %v435
  %v514 = vunpack.c.l.b16 %v436
  %v515 = vunpack.c.h.b16 %v436
  %v516 = vunpack.c.l.b16 %v437
  %v517 = vunpack.c.h.b16 %v437
  %v518 = vunpack.c.l.b16 %v438
  %v519 = vunpack.c.h.b16 %v438
  %v520 = vunpack.c.l.b16 %v439
  %v521 = vunpack.c.h.b16 %v439
  %v522 = vunpack.c.l.b16 %v440
  %v523 = vunpack.c.h.b16 %v440
  %v524 = vunpack.c.l.b16 %v441
  %v525 = vunpack.c.h.b16 %v441
  %v526 = vunpack.c.l.b16 %v442
  %v527 = vunpack.c.h.b16 %v442
  %v528 = vunpack.c.l.b16 %v443
  %v529 = vunpack.c.h.b16 %v443
  %v530 = vunpack.c.l.b16 %v444
  %v531 = vunpack.c.h.b16 %v444
  %v532 = vunpack.c.l.b16 %v445
  %v533 = vunpack.c.h.b16 %v445
  %v534 = vunpack.c.l.b16 %v446
  %v535 = vunpack.c.h.b16 %v446
  %v536 = vunpack.c.l.b16 %v447
  %v537 = vunpack.c.h.b16 %v447
  %v538 = vunpack.c.l.b16 %v448
  %v539 = vunpack.c.h.b16 %v448
  %v540 = vunpack.c.l.b16 %v449
  %v541 = vunpack.c.h.b16 %v449
  %v542 = vunpack.c.l.b16 %v450
  %v543 = vunpack.c.h.b16 %v450
  %v544 = vunpack.c.l.b16 %v451
  %v545 = vunpack.c.h.b16 %v451
  %v546 = vunpack.c.l.b16 %v452
  %v547 = vunpack.c.h.b16 %v452
  %v548 = vunpack.c.l.b16 %v453
  %v549 = vunpack.c.h.b16 %v453
  %v550 = vunpack.c.l.b16 %v454
  %v551 = vunpack.c.h.b16 %v454
  %v552 = vunpack.c.l.b16 %v455
  %v553 = vunpack.c.h.b16 %v455
  %v554 = vunpack.c.l.b16 %v456
  %v555 = vunpack.c.h.b16 %v456
  %v556 = vunpack.c.l.b16 %v457
  %v557 = vunpack.c.h.b16 %v457
  %v558 = vunpack.c.l.b16 %v458
  %v559 = vunpack.c.h.b16 %v458
  %v560 = vunpack.c.l.b16 %v459
  %v561 = vunpack.c.h.b16 %v459
  %v562 = vunpack.c.l.b16 %v460
  %v563 = vunpack.c.h.b16 %v460
  %v564 = vunpack.c.l.b16 %v461
  %v565 = vunpack.c.h.b16 %v461
  %v566 = vunpack.c.l.b16 %v462
  %v567 = vunpack.c.h.b16 %v462
  %v568 = vunpack.c.l.b16 %v463
  %v569 = vunpack.c.h.b16 %v463
  %v570 = vunpack.c.l.b16 %v464
  %v571 = vunpack.c.h.b16 %v464
  %v572 = vunpack.c.l.b16 %v465
  %v573 = vunpack.c.h.b16 %v465
  %v574 = vpack.c.b16 %v512, %v510
  %v575 = vpack.c.b16 %v513, %v511
  %v576 = vpack.c.b16 %v516, %v514
  %v577 = vpack.c.b16 %v517, %v515
  %v578 = vpack.c.b16 %v520, %v518
  %v579 = vpack.c.b16 %v521, %v519
  %v580 = vpack.c.b16 %v524, %v522
  %v581 = vpack.c.b16 %v525, %v523
  %v582 = vpack.c.b16 %v528, %v526
  %v583 = vpack.c.b16 %v529, %v527
  %v584 = vpack.c.b16 %v532, %v530
  %v585 = vpack.c.b16 %v533, %v531
  %v586 = vpack.c.b16 %v536, %v534
  %v587 = vpack.c.b16 %v537, %v535
  %v588 = vpack.c.b16 %v540, %v538
  %v589 = vpack.c.b16 %v541, %v539
  %v590 = vpack.c.b16 %v544, %v542
  %v591 = vpack.c.b16 %v545, %v543
  %v592 = vpack.c.b16 %v548, %v546
  %v593 = vpack.c.b16 %v549, %v547
  %v594 = vpack.c.b16 %v552, %v550
  %v595 = vpack.c.b16 %v553, %v551
  %v596 = vpack.c.b16 %v556, %v554
  %v597 = vpack.c.b16 %v557, %v555
  %v598 = vpack.c.b16 %v560, %v558
  %v599 = vpack.c.b16 %v561, %v559
  %v600 = vpack.c.b16 %v564, %v562
  %v601 = vpack.c.b16 %v565, %v563
  %v602 = vpack.c.b16 %v568, %v566
  %v603 = vpack.c.b16 %v569, %v567
  %v604 = vpack.c.b16 %v572, %v570
  %v605 = vpack.c.b16 %v573, %v571
  %638 = vmatprep.subr.bf16.mxu0 %v589
  %639 = vmatpush1.bf16.msra.mxu0 %v588
  %640 = vmatprep.subr.bf16.mxu0 %v587
  %641 = vmatpush1.bf16.msra.mxu0 %v586
  %642 = vmatprep.subr.bf16.mxu0 %v585
  %643 = vmatpush1.bf16.msra.mxu0 %v584
  %644 = vmatprep.subr.bf16.mxu0 %v583
  %645 = vmatpush1.bf16.msra.mxu0 %v582
  %646 = vmatprep.subr.bf16.mxu0 %v581
  %647 = vmatpush1.bf16.msra.mxu0 %v580
  %648 = vmatprep.subr.bf16.mxu0 %v579
  %649 = vmatpush1.bf16.msra.mxu0 %v578
  %650 = vmatprep.subr.bf16.mxu0 %v577
  %651 = vmatpush1.bf16.msra.mxu0 %v576
  %652 = vmatprep.subr.bf16.mxu0 %v575
  %653 = vmatpush1.bf16.msra.mxu0 %v574
  %654 = vmatprep.subr.bf16.mxu0 %v605
  %655 = vmatpush2.bf16.msra.mxu0 %v604
  %656 = vmatprep.subr.bf16.mxu0 %v603
  %657 = vmatpush2.bf16.msra.mxu0 %v602
  %658 = vmatprep.subr.bf16.mxu0 %v601
  %659 = vmatpush2.bf16.msra.mxu0 %v600
  %660 = vmatprep.subr.bf16.mxu0 %v599
  %661 = vmatpush2.bf16.msra.mxu0 %v598
  %662 = vmatprep.subr.bf16.mxu0 %v597
  %663 = vmatpush2.bf16.msra.mxu0 %v596
  %664 = vmatprep.subr.bf16.mxu0 %v595
  %665 = vmatpush2.bf16.msra.mxu0 %v594
  %666 = vmatprep.subr.bf16.mxu0 %v593
  %667 = vmatpush2.bf16.msra.mxu0 %v592
  %668 = vmatprep.subr.bf16.mxu0 %v591
  %669 = vmatpush2.bf16.msra.mxu0 %v590
  %670 = vmatprep.mubr.bf16.mxu0 %v419
  %671 = vmatmul.mubr.bf16.gmra.mxu0 %v418
  %v672 = vpop.f32.mrf.mxu0
  %v673 = vadd.f32 %v471, %v672
  %v674 = vpop.f32.mrf.mxu0
  %v675 = vadd.f32 %v475, %v674
  %v676 = vpop.f32.mrf.mxu0
  %v677 = vadd.f32 %v471, %v676
  %v678 = vpop.f32.mrf.mxu0
  %v679 = vadd.f32 %v475, %v678
  %680 = vmatprep.mubr.bf16.mxu0 %v421
  %681 = vmatmul.mubr.bf16.gmra.mxu0 %v420
  %v682 = vpop.f32.mrf.mxu0
  %v683 = vadd.f32 %v471, %v682
  %v684 = vpop.f32.mrf.mxu0
  %v685 = vadd.f32 %v475, %v684
  %v686 = vpop.f32.mrf.mxu0
  %v687 = vadd.f32 %v471, %v686
  %v688 = vpop.f32.mrf.mxu0
  %v689 = vadd.f32 %v475, %v688
  %690 = vmatprep.mubr.bf16.mxu0 %v423
  %691 = vmatmul.mubr.bf16.gmra.mxu0 %v422
  %v692 = vpop.f32.mrf.mxu0
  %v693 = vadd.f32 %v471, %v692
  %v694 = vpop.f32.mrf.mxu0
  %v695 = vadd.f32 %v475, %v694
  %v696 = vpop.f32.mrf.mxu0
  %v697 = vadd.f32 %v471, %v696
  %v698 = vpop.f32.mrf.mxu0
  %v699 = vadd.f32 %v475, %v698
  %700 = vmatprep.mubr.bf16.mxu0 %v425
  %701 = vmatmul.mubr.bf16.gmra.mxu0 %v424
  %v702 = vpop.f32.mrf.mxu0
  %v703 = vadd.f32 %v471, %v702
  %v704 = vpop.f32.mrf.mxu0
  %v705 = vadd.f32 %v475, %v704
  %v706 = vpop.f32.mrf.mxu0
  %v707 = vadd.f32 %v471, %v706
  %v708 = vpop.f32.mrf.mxu0
  %v709 = vadd.f32 %v475, %v708
  %710 = vmatprep.mubr.bf16.mxu0 %v427
  %711 = vmatmul.mubr.bf16.gmra.mxu0 %v426
  %v712 = vpop.f32.mrf.mxu0
  %v713 = vadd.f32 %v471, %v712
  %v714 = vpop.f32.mrf.mxu0
  %v715 = vadd.f32 %v475, %v714
  %v716 = vpop.f32.mrf.mxu0
  %v717 = vadd.f32 %v471, %v716
  %v718 = vpop.f32.mrf.mxu0
  %v719 = vadd.f32 %v475, %v718
  %720 = vmatprep.mubr.bf16.mxu0 %v429
  %721 = vmatmul.mubr.bf16.gmra.mxu0 %v428
  %v722 = vpop.f32.mrf.mxu0
  %v723 = vadd.f32 %v471, %v722
  %v724 = vpop.f32.mrf.mxu0
  %v725 = vadd.f32 %v475, %v724
  %v726 = vpop.f32.mrf.mxu0
  %v727 = vadd.f32 %v471, %v726
  %v728 = vpop.f32.mrf.mxu0
  %v729 = vadd.f32 %v475, %v728
  %730 = vmatprep.mubr.bf16.mxu0 %v431
  %731 = vmatmul.mubr.bf16.gmra.mxu0 %v430
  %v732 = vpop.f32.mrf.mxu0
  %v733 = vadd.f32 %v471, %v732
  %v734 = vpop.f32.mrf.mxu0
  %v735 = vadd.f32 %v475, %v734
  %v736 = vpop.f32.mrf.mxu0
  %v737 = vadd.f32 %v471, %v736
  %v738 = vpop.f32.mrf.mxu0
  %v739 = vadd.f32 %v475, %v738
  %740 = vmatprep.mubr.bf16.mxu0 %v433
  %741 = vmatmul.mubr.bf16.gmra.mxu0 %v432
  %v742 = vpop.f32.mrf.mxu0
  %v743 = vadd.f32 %v471, %v742
  %v744 = vpop.f32.mrf.mxu0
  %v745 = vadd.f32 %v475, %v744
  %v746 = vpop.f32.mrf.mxu0
  %v747 = vadd.f32 %v471, %v746
  %v748 = vpop.f32.mrf.mxu0
  %v749 = vadd.f32 %v475, %v748
  %750 = vdwg.mxu0
  %v751 = vpack.c.bf16 %v677, %v673
  %v752 = vpack.c.bf16 %v679, %v675
  %v753 = vpack.c.bf16 %v687, %v683
  %v754 = vpack.c.bf16 %v689, %v685
  %v755 = vpack.c.bf16 %v697, %v693
  %v756 = vpack.c.bf16 %v699, %v695
  %v757 = vpack.c.bf16 %v707, %v703
  %v758 = vpack.c.bf16 %v709, %v705
  %v759 = vpack.c.bf16 %v717, %v713
  %v760 = vpack.c.bf16 %v719, %v715
  %v761 = vpack.c.bf16 %v727, %v723
  %v762 = vpack.c.bf16 %v729, %v725
  %v763 = vpack.c.bf16 %v737, %v733
  %v764 = vpack.c.bf16 %v739, %v735
  %v765 = vpack.c.bf16 %v747, %v743
  %v766 = vpack.c.bf16 %v749, %v745
  %v767 = vxor.u32 %v751, 2147516416
  %v768 = vxor.u32 %v752, 2147516416
  %v769 = vxor.u32 %v753, 2147516416
  %v770 = vxor.u32 %v754, 2147516416
  %v771 = vxor.u32 %v755, 2147516416
  %v772 = vxor.u32 %v756, 2147516416
  %v773 = vxor.u32 %v757, 2147516416
  %v774 = vxor.u32 %v758, 2147516416
  %v775 = vxor.u32 %v759, 2147516416
  %v776 = vxor.u32 %v760, 2147516416
  %v777 = vxor.u32 %v761, 2147516416
  %v778 = vxor.u32 %v762, 2147516416
  %v779 = vxor.u32 %v763, 2147516416
  %v780 = vxor.u32 %v764, 2147516416
  %v781 = vxor.u32 %v765, 2147516416
  %v782 = vxor.u32 %v766, 2147516416
  %v784 = vmul.bf16 %v767, 1069105081
  %v785 = vpow.bf16.pop %v784
  %v787 = vmul.bf16 %v768, 1069105081
  %v788 = vpow.bf16.pop %v787
  %v790 = vmul.bf16 %v769, 1069105081
  %v791 = vpow.bf16.pop %v790
  %v793 = vmul.bf16 %v770, 1069105081
  %v794 = vpow.bf16.pop %v793
  %v796 = vmul.bf16 %v771, 1069105081
  %v797 = vpow.bf16.pop %v796
  %v799 = vmul.bf16 %v772, 1069105081
  %v800 = vpow.bf16.pop %v799
  %v802 = vmul.bf16 %v773, 1069105081
  %v803 = vpow.bf16.pop %v802
  %v805 = vmul.bf16 %v774, 1069105081
  %v806 = vpow.bf16.pop %v805
  %v808 = vmul.bf16 %v775, 1069105081
  %v809 = vpow.bf16.pop %v808
  %v811 = vmul.bf16 %v776, 1069105081
  %v812 = vpow.bf16.pop %v811
  %v814 = vmul.bf16 %v777, 1069105081
  %v815 = vpow.bf16.pop %v814
  %v817 = vmul.bf16 %v778, 1069105081
  %v818 = vpow.bf16.pop %v817
  %v820 = vmul.bf16 %v779, 1069105081
  %v821 = vpow.bf16.pop %v820
  %v823 = vmul.bf16 %v780, 1069105081
  %v824 = vpow.bf16.pop %v823
  %v826 = vmul.bf16 %v781, 1069105081
  %v827 = vpow.bf16.pop %v826
  %v829 = vmul.bf16 %v782, 1069105081
  %v830 = vpow.bf16.pop %v829
  %v831 = vadd.bf16 %v785, 1065369472
  %v832 = vadd.bf16 %v788, 1065369472
  %v833 = vadd.bf16 %v791, 1065369472
  %v834 = vadd.bf16 %v794, 1065369472
  %v835 = vadd.bf16 %v797, 1065369472
  %v836 = vadd.bf16 %v800, 1065369472
  %v837 = vadd.bf16 %v803, 1065369472
  %v838 = vadd.bf16 %v806, 1065369472
  %v839 = vadd.bf16 %v809, 1065369472
  %v840 = vadd.bf16 %v812, 1065369472
  %v841 = vadd.bf16 %v815, 1065369472
  %v842 = vadd.bf16 %v818, 1065369472
  %v843 = vadd.bf16 %v821, 1065369472
  %v844 = vadd.bf16 %v824, 1065369472
  %v845 = vadd.bf16 %v827, 1065369472
  %v846 = vadd.bf16 %v830, 1065369472
  %v847 = vrcp.bf16.pop %v831
  %v848 = vmul.bf16 1065369472, %v847
  %v849 = vrcp.bf16.pop %v832
  %v850 = vmul.bf16 1065369472, %v849
  %v851 = vrcp.bf16.pop %v833
  %v852 = vmul.bf16 1065369472, %v851
  %v853 = vrcp.bf16.pop %v834
  %v854 = vmul.bf16 1065369472, %v853
  %v855 = vrcp.bf16.pop %v835
  %v856 = vmul.bf16 1065369472, %v855
  %v857 = vrcp.bf16.pop %v836
  %v858 = vmul.bf16 1065369472, %v857
  %v859 = vrcp.bf16.pop %v837
  %v860 = vmul.bf16 1065369472, %v859
  %v861 = vrcp.bf16.pop %v838
  %v862 = vmul.bf16 1065369472, %v861
  %v863 = vrcp.bf16.pop %v839
  %v864 = vmul.bf16 1065369472, %v863
  %v865 = vrcp.bf16.pop %v840
  %v866 = vmul.bf16 1065369472, %v865
  %v867 = vrcp.bf16.pop %v841
  %v868 = vmul.bf16 1065369472, %v867
  %v869 = vrcp.bf16.pop %v842
  %v870 = vmul.bf16 1065369472, %v869
  %v871 = vrcp.bf16.pop %v843
  %v872 = vmul.bf16 1065369472, %v871
  %v873 = vrcp.bf16.pop %v844
  %v874 = vmul.bf16 1065369472, %v873
  %v875 = vrcp.bf16.pop %v845
  %v876 = vmul.bf16 1065369472, %v875
  %v877 = vrcp.bf16.pop %v846
  %v878 = vmul.bf16 1065369472, %v877
  %v879 = vunpack.c.l.bf16 %v848
  %v880 = vunpack.c.l.bf16 %v850
  %v881 = vunpack.c.h.bf16 %v848
  %v882 = vunpack.c.h.bf16 %v850
  %v883 = vunpack.c.l.bf16 %v852
  %v884 = vunpack.c.l.bf16 %v854
  %v885 = vunpack.c.h.bf16 %v852
  %v886 = vunpack.c.h.bf16 %v854
  %v887 = vunpack.c.l.bf16 %v856
  %v888 = vunpack.c.l.bf16 %v858
  %v889 = vunpack.c.h.bf16 %v856
  %v890 = vunpack.c.h.bf16 %v858
  %v891 = vunpack.c.l.bf16 %v860
  %v892 = vunpack.c.l.bf16 %v862
  %v893 = vunpack.c.h.bf16 %v860
  %v894 = vunpack.c.h.bf16 %v862
  %v895 = vunpack.c.l.bf16 %v864
  %v896 = vunpack.c.l.bf16 %v866
  %v897 = vunpack.c.h.bf16 %v864
  %v898 = vunpack.c.h.bf16 %v866
  %v899 = vunpack.c.l.bf16 %v868
  %v900 = vunpack.c.l.bf16 %v870
  %v901 = vunpack.c.h.bf16 %v868
  %v902 = vunpack.c.h.bf16 %v870
  %v903 = vunpack.c.l.bf16 %v872
  %v904 = vunpack.c.l.bf16 %v874
  %v905 = vunpack.c.h.bf16 %v872
  %v906 = vunpack.c.h.bf16 %v874
  %v907 = vunpack.c.l.bf16 %v876
  %v908 = vunpack.c.l.bf16 %v878
  %v909 = vunpack.c.h.bf16 %v876
  %v910 = vunpack.c.h.bf16 %v878
  %v911 = vmul.f32 %v673, %v879
  %v912 = vmul.f32 %v675, %v880
  %v913 = vmul.f32 %v677, %v881
  %v914 = vmul.f32 %v679, %v882
  %v915 = vmul.f32 %v683, %v883
  %v916 = vmul.f32 %v685, %v884
  %v917 = vmul.f32 %v687, %v885
  %v918 = vmul.f32 %v689, %v886
  %v919 = vmul.f32 %v693, %v887
  %v920 = vmul.f32 %v695, %v888
  %v921 = vmul.f32 %v697, %v889
  %v922 = vmul.f32 %v699, %v890
  %v923 = vmul.f32 %v703, %v891
  %v924 = vmul.f32 %v705, %v892
  %v925 = vmul.f32 %v707, %v893
  %v926 = vmul.f32 %v709, %v894
  %v927 = vmul.f32 %v713, %v895
  %v928 = vmul.f32 %v715, %v896
  %v929 = vmul.f32 %v717, %v897
  %v930 = vmul.f32 %v719, %v898
  %v931 = vmul.f32 %v723, %v899
  %v932 = vmul.f32 %v725, %v900
  %v933 = vmul.f32 %v727, %v901
  %v934 = vmul.f32 %v729, %v902
  %v935 = vmul.f32 %v733, %v903
  %v936 = vmul.f32 %v735, %v904
  %v937 = vmul.f32 %v737, %v905
  %v938 = vmul.f32 %v739, %v906
  %v939 = vmul.f32 %v743, %v907
  %v940 = vmul.f32 %v745, %v908
  %v941 = vmul.f32 %v747, %v909
  %v942 = vmul.f32 %v749, %v910
  %v943 = vpack.c.bf16 %v913, %v911
  %v944 = vpack.c.bf16 %v914, %v912
  %v945 = vpack.c.bf16 %v917, %v915
  %v946 = vpack.c.bf16 %v918, %v916
  %v947 = vpack.c.bf16 %v921, %v919
  %v948 = vpack.c.bf16 %v922, %v920
  %v949 = vpack.c.bf16 %v925, %v923
  %v950 = vpack.c.bf16 %v926, %v924
  %v951 = vpack.c.bf16 %v929, %v927
  %v952 = vpack.c.bf16 %v930, %v928
  %v953 = vpack.c.bf16 %v933, %v931
  %v954 = vpack.c.bf16 %v934, %v932
  %v955 = vpack.c.bf16 %v937, %v935
  %v956 = vpack.c.bf16 %v938, %v936
  %v957 = vpack.c.bf16 %v941, %v939
  %v958 = vpack.c.bf16 %v942, %v940
  %v959 = vld [vmem:[%s5] sm:$0xf]
  %v960 = vld [vmem:[%s5 + $0x4] sm:$0xf]
  %v961 = vld [vmem:[%s5 + $0x8] sm:$0xf]
  %v962 = vld [vmem:[%s5 + $0xc] sm:$0xf]
  %v963 = vld [vmem:[%s5 + $0x10] sm:$0xf]
  %v964 = vld [vmem:[%s5 + $0x14] sm:$0xf]
  %v965 = vld [vmem:[%s5 + $0x18] sm:$0xf]
  %v966 = vld [vmem:[%s5 + $0x1c] sm:$0xf]
  %v967 = vld [vmem:[%s5 + $0x20] sm:$0xf]
  %v968 = vld [vmem:[%s5 + $0x24] sm:$0xf]
  %v969 = vld [vmem:[%s5 + $0x28] sm:$0xf]
  %v970 = vld [vmem:[%s5 + $0x2c] sm:$0xf]
  %v971 = vld [vmem:[%s5 + $0x30] sm:$0xf]
  %v972 = vld [vmem:[%s5 + $0x34] sm:$0xf]
  %v973 = vld [vmem:[%s5 + $0x38] sm:$0xf]
  %v974 = vld [vmem:[%s5 + $0x3c] sm:$0xf]
  %v975 = vld [vmem:[%s5 + $0x40] sm:$0xf]
  %v976 = vld [vmem:[%s5 + $0x44] sm:$0xf]
  %v977 = vld [vmem:[%s5 + $0x48] sm:$0xf]
  %v978 = vld [vmem:[%s5 + $0x4c] sm:$0xf]
  %v979 = vld [vmem:[%s5 + $0x50] sm:$0xf]
  %v980 = vld [vmem:[%s5 + $0x54] sm:$0xf]
  %v981 = vld [vmem:[%s5 + $0x58] sm:$0xf]
  %v982 = vld [vmem:[%s5 + $0x5c] sm:$0xf]
  %v983 = vld [vmem:[%s5 + $0x60] sm:$0xf]
  %v984 = vld [vmem:[%s5 + $0x64] sm:$0xf]
  %v985 = vld [vmem:[%s5 + $0x68] sm:$0xf]
  %v986 = vld [vmem:[%s5 + $0x6c] sm:$0xf]
  %v987 = vld [vmem:[%s5 + $0x70] sm:$0xf]
  %v988 = vld [vmem:[%s5 + $0x74] sm:$0xf]
  %v989 = vld [vmem:[%s5 + $0x78] sm:$0xf]
  %v990 = vld [vmem:[%s5 + $0x7c] sm:$0xf]
  %v1023 = vunpack.c.l.b16 %v959
  %v1024 = vunpack.c.l.b16 %v960
  %v1025 = vunpack.c.l.b16 %v961
  %v1026 = vunpack.c.l.b16 %v962
  %v1027 = vunpack.c.l.b16 %v963
  %v1028 = vunpack.c.l.b16 %v964
  %v1029 = vunpack.c.l.b16 %v965
  %v1030 = vunpack.c.l.b16 %v966
  %v1031 = vunpack.c.l.b16 %v967
  %v1032 = vunpack.c.l.b16 %v968
  %v1033 = vunpack.c.l.b16 %v969
  %v1034 = vunpack.c.l.b16 %v970
  %v1035 = vunpack.c.l.b16 %v971
  %v1036 = vunpack.c.l.b16 %v972
  %v1037 = vunpack.c.l.b16 %v973
  %v1038 = vunpack.c.l.b16 %v974
  %v1039 = vunpack.c.l.b16 %v975
  %v1040 = vunpack.c.l.b16 %v976
  %v1041 = vunpack.c.l.b16 %v977
  %v1042 = vunpack.c.l.b16 %v978
  %v1043 = vunpack.c.l.b16 %v979
  %v1044 = vunpack.c.l.b16 %v980
  %v1045 = vunpack.c.l.b16 %v981
  %v1046 = vunpack.c.l.b16 %v982
  %v1047 = vunpack.c.l.b16 %v983
  %v1048 = vunpack.c.l.b16 %v984
  %v1049 = vunpack.c.l.b16 %v985
  %v1050 = vunpack.c.l.b16 %v986
  %v1051 = vunpack.c.l.b16 %v987
  %v1052 = vunpack.c.l.b16 %v988
  %v1053 = vunpack.c.l.b16 %v989
  %v1054 = vunpack.c.l.b16 %v990
  %v1055 = vpack.c.b16 %v1024, %v1023
  %v1056 = vpack.c.b16 %v1026, %v1025
  %v1057 = vpack.c.b16 %v1028, %v1027
  %v1058 = vpack.c.b16 %v1030, %v1029
  %v1059 = vpack.c.b16 %v1032, %v1031
  %v1060 = vpack.c.b16 %v1034, %v1033
  %v1061 = vpack.c.b16 %v1036, %v1035
  %v1062 = vpack.c.b16 %v1038, %v1037
  %v1063 = vpack.c.b16 %v1040, %v1039
  %v1064 = vpack.c.b16 %v1042, %v1041
  %v1065 = vpack.c.b16 %v1044, %v1043
  %v1066 = vpack.c.b16 %v1046, %v1045
  %v1067 = vpack.c.b16 %v1048, %v1047
  %v1068 = vpack.c.b16 %v1050, %v1049
  %v1069 = vpack.c.b16 %v1052, %v1051
  %v1070 = vpack.c.b16 %v1054, %v1053
  %1087 = vmatprep.subr.bf16.mxu0 0
  %1088 = vmatpush1.bf16.msra.mxu0 %v1062
  %1089 = vmatprep.subr.bf16.mxu0 0
  %1090 = vmatpush1.bf16.msra.mxu0 %v1061
  %1091 = vmatprep.subr.bf16.mxu0 0
  %1092 = vmatpush1.bf16.msra.mxu0 %v1060
  %1093 = vmatprep.subr.bf16.mxu0 0
  %1094 = vmatpush1.bf16.msra.mxu0 %v1059
  %1095 = vmatprep.subr.bf16.mxu0 0
  %1096 = vmatpush1.bf16.msra.mxu0 %v1058
  %1097 = vmatprep.subr.bf16.mxu0 0
  %1098 = vmatpush1.bf16.msra.mxu0 %v1057
  %1099 = vmatprep.subr.bf16.mxu0 0
  %1100 = vmatpush1.bf16.msra.mxu0 %v1056
  %1101 = vmatprep.subr.bf16.mxu0 0
  %1102 = vmatpush1.bf16.msra.mxu0 %v1055
  %1103 = vmatprep.subr.bf16.mxu0 0
  %1104 = vmatpush2.bf16.msra.mxu0 %v1070
  %1105 = vmatprep.subr.bf16.mxu0 0
  %1106 = vmatpush2.bf16.msra.mxu0 %v1069
  %1107 = vmatprep.subr.bf16.mxu0 0
  %1108 = vmatpush2.bf16.msra.mxu0 %v1068
  %1109 = vmatprep.subr.bf16.mxu0 0
  %1110 = vmatpush2.bf16.msra.mxu0 %v1067
  %1111 = vmatprep.subr.bf16.mxu0 0
  %1112 = vmatpush2.bf16.msra.mxu0 %v1066
  %1113 = vmatprep.subr.bf16.mxu0 0
  %1114 = vmatpush2.bf16.msra.mxu0 %v1065
  %1115 = vmatprep.subr.bf16.mxu0 0
  %1116 = vmatpush2.bf16.msra.mxu0 %v1064
  %1117 = vmatprep.subr.bf16.mxu0 0
  %1118 = vmatpush2.bf16.msra.mxu0 %v1063
  %1119 = vmatprep.mubr.bf16.mxu0 %v944
  %1120 = vmatmul.mubr.bf16.gmra.mxu0 %v943
  %v1121 = vpop.f32.mrf.mxu0
  %v1122 = vadd.f32 0.0, %v1121
  %v1123 = vpop.f32.mrf.mxu0
  %v1124 = vpop.f32.mrf.mxu0
  %v1125 = vadd.f32 0.0, %v1124
  %v1126 = vpop.f32.mrf.mxu0
  %1127 = vmatprep.mubr.bf16.mxu0 %v946
  %1128 = vmatmul.mubr.bf16.gmra.mxu0 %v945
  %v1129 = vpop.f32.mrf.mxu0
  %v1130 = vadd.f32 0.0, %v1129
  %v1131 = vpop.f32.mrf.mxu0
  %v1132 = vpop.f32.mrf.mxu0
  %v1133 = vadd.f32 0.0, %v1132
  %v1134 = vpop.f32.mrf.mxu0
  %1135 = vmatprep.mubr.bf16.mxu0 %v948
  %1136 = vmatmul.mubr.bf16.gmra.mxu0 %v947
  %v1137 = vpop.f32.mrf.mxu0
  %v1138 = vadd.f32 0.0, %v1137
  %v1139 = vpop.f32.mrf.mxu0
  %v1140 = vpop.f32.mrf.mxu0
  %v1141 = vadd.f32 0.0, %v1140
  %v1142 = vpop.f32.mrf.mxu0
  %1143 = vmatprep.mubr.bf16.mxu0 %v950
  %1144 = vmatmul.mubr.bf16.gmra.mxu0 %v949
  %v1145 = vpop.f32.mrf.mxu0
  %v1146 = vadd.f32 0.0, %v1145
  %v1147 = vpop.f32.mrf.mxu0
  %v1148 = vpop.f32.mrf.mxu0
  %v1149 = vadd.f32 0.0, %v1148
  %v1150 = vpop.f32.mrf.mxu0
  %1151 = vmatprep.mubr.bf16.mxu0 %v952
  %1152 = vmatmul.mubr.bf16.gmra.mxu0 %v951
  %v1153 = vpop.f32.mrf.mxu0
  %v1154 = vadd.f32 0.0, %v1153
  %v1155 = vpop.f32.mrf.mxu0
  %v1156 = vpop.f32.mrf.mxu0
  %v1157 = vadd.f32 0.0, %v1156
  %v1158 = vpop.f32.mrf.mxu0
  %1159 = vmatprep.mubr.bf16.mxu0 %v954
  %1160 = vmatmul.mubr.bf16.gmra.mxu0 %v953
  %v1161 = vpop.f32.mrf.mxu0
  %v1162 = vadd.f32 0.0, %v1161
  %v1163 = vpop.f32.mrf.mxu0
  %v1164 = vpop.f32.mrf.mxu0
  %v1165 = vadd.f32 0.0, %v1164
  %v1166 = vpop.f32.mrf.mxu0
  %1167 = vmatprep.mubr.bf16.mxu0 %v956
  %1168 = vmatmul.mubr.bf16.gmra.mxu0 %v955
  %v1169 = vpop.f32.mrf.mxu0
  %v1170 = vadd.f32 0.0, %v1169
  %v1171 = vpop.f32.mrf.mxu0
  %v1172 = vpop.f32.mrf.mxu0
  %v1173 = vadd.f32 0.0, %v1172
  %v1174 = vpop.f32.mrf.mxu0
  %1175 = vmatprep.mubr.bf16.mxu0 %v958
  %1176 = vmatmul.mubr.bf16.gmra.mxu0 %v957
  %v1177 = vpop.f32.mrf.mxu0
  %v1178 = vadd.f32 0.0, %v1177
  %v1179 = vpop.f32.mrf.mxu0
  %v1180 = vpop.f32.mrf.mxu0
  %v1181 = vadd.f32 0.0, %v1180
  %v1182 = vpop.f32.mrf.mxu0
  %1183 = vdwg.mxu0
  %v1184 = vlaneseq
  %v1185 = vshrl.u32 %v1184, 7
  %v1186 = vadd.s32 %v1185, 8
  %v1187 = vadd.s32 %v1185, 16
  %v1188 = vadd.s32 %v1185, 24
  %v1189 = vadd.s32 %v1185, 32
  %v1190 = vadd.s32 %v1185, 40
  %v1191 = vadd.s32 %v1185, 48
  %v1192 = vadd.s32 %v1185, 56
  %v1193 = vadd.s32 %v1185, 64
  %v1194 = vadd.s32 %v1185, 72
  %v1195 = vadd.s32 %v1185, 80
  %v1196 = vadd.s32 %v1185, 88
  %v1197 = vadd.s32 %v1185, 96
  %v1198 = vadd.s32 %v1185, 104
  %v1199 = vadd.s32 %v1185, 112
  %v1200 = vadd.s32 %v1185, 120
  %v1201 = vlaneseq
  %v1202 = vand.u32 %v1201, 127
  %v1203 = vand.u32 %v1185, 127
  %v1204 = vand.u32 %v1186, 127
  %v1205 = vand.u32 %v1187, 127
  %v1206 = vand.u32 %v1188, 127
  %v1207 = vand.u32 %v1189, 127
  %v1208 = vand.u32 %v1190, 127
  %v1209 = vand.u32 %v1191, 127
  %v1210 = vand.u32 %v1192, 127
  %v1211 = vand.u32 %v1193, 127
  %v1212 = vand.u32 %v1194, 127
  %v1213 = vand.u32 %v1195, 127
  %v1214 = vand.u32 %v1196, 127
  %v1215 = vand.u32 %v1197, 127
  %v1216 = vand.u32 %v1198, 127
  %v1217 = vand.u32 %v1199, 127
  %v1218 = vand.u32 %v1200, 127
  %vm1219 = vcmp.eq.s32.totalorder %v1203, %v1202
  %vm1220 = vcmp.eq.s32.totalorder %v1204, %v1202
  %vm1221 = vcmp.eq.s32.totalorder %v1205, %v1202
  %vm1222 = vcmp.eq.s32.totalorder %v1206, %v1202
  %vm1223 = vcmp.eq.s32.totalorder %v1207, %v1202
  %vm1224 = vcmp.eq.s32.totalorder %v1208, %v1202
  %vm1225 = vcmp.eq.s32.totalorder %v1209, %v1202
  %vm1226 = vcmp.eq.s32.totalorder %v1210, %v1202
  %vm1227 = vcmp.eq.s32.totalorder %v1211, %v1202
  %vm1228 = vcmp.eq.s32.totalorder %v1212, %v1202
  %vm1229 = vcmp.eq.s32.totalorder %v1213, %v1202
  %vm1230 = vcmp.eq.s32.totalorder %v1214, %v1202
  %vm1231 = vcmp.eq.s32.totalorder %v1215, %v1202
  %vm1232 = vcmp.eq.s32.totalorder %v1216, %v1202
  %vm1233 = vcmp.eq.s32.totalorder %v1217, %v1202
  %vm1234 = vcmp.eq.s32.totalorder %v1218, %v1202
  %v1235 = vsel %vm1219, 1, 0
  %v1236 = vsel %vm1220, 1, 0
  %v1237 = vsel %vm1221, 1, 0
  %v1238 = vsel %vm1222, 1, 0
  %v1239 = vsel %vm1223, 1, 0
  %v1240 = vsel %vm1224, 1, 0
  %v1241 = vsel %vm1225, 1, 0
  %v1242 = vsel %vm1226, 1, 0
  %v1243 = vsel %vm1227, 1, 0
  %v1244 = vsel %vm1228, 1, 0
  %v1245 = vsel %vm1229, 1, 0
  %v1246 = vsel %vm1230, 1, 0
  %v1247 = vsel %vm1231, 1, 0
  %v1248 = vsel %vm1232, 1, 0
  %v1249 = vsel %vm1233, 1, 0
  %v1250 = vsel %vm1234, 1, 0
  %v1251 = vcvt.s32.f32 %v1235
  %v1252 = vcvt.s32.f32 %v1236
  %v1253 = vcvt.s32.f32 %v1237
  %v1254 = vcvt.s32.f32 %v1238
  %v1255 = vcvt.s32.f32 %v1239
  %v1256 = vcvt.s32.f32 %v1240
  %v1257 = vcvt.s32.f32 %v1241
  %v1258 = vcvt.s32.f32 %v1242
  %v1259 = vcvt.s32.f32 %v1243
  %v1260 = vcvt.s32.f32 %v1244
  %v1261 = vcvt.s32.f32 %v1245
  %v1262 = vcvt.s32.f32 %v1246
  %v1263 = vcvt.s32.f32 %v1247
  %v1264 = vcvt.s32.f32 %v1248
  %v1265 = vcvt.s32.f32 %v1249
  %v1266 = vcvt.s32.f32 %v1250
  %v1267 = vmul.f32 %v1122, %v1251
  %v1268 = vmul.f32 %v1125, %v1252
  %v1269 = vmul.f32 %v1130, %v1253
  %v1270 = vmul.f32 %v1133, %v1254
  %v1271 = vmul.f32 %v1138, %v1255
  %v1272 = vmul.f32 %v1141, %v1256
  %v1273 = vmul.f32 %v1146, %v1257
  %v1274 = vmul.f32 %v1149, %v1258
  %v1275 = vmul.f32 %v1154, %v1259
  %v1276 = vmul.f32 %v1157, %v1260
  %v1277 = vmul.f32 %v1162, %v1261
  %v1278 = vmul.f32 %v1165, %v1262
  %v1279 = vmul.f32 %v1170, %v1263
  %v1280 = vmul.f32 %v1173, %v1264
  %v1281 = vmul.f32 %v1178, %v1265
  %v1282 = vmul.f32 %v1181, %v1266
  %v1283 = vshra.s32 %v1202, 7
  %vm1284 = vcmp.eq.s32.totalorder %v1283, %v1185
  %v1285 = vsel %vm1284, 1, 0
  %v1286 = vcvt.s32.f32 %v1285
  %v1287 = vld [vmem:[%s6] sm:$0x1]
  %1288 = vmatprep.subr.mxu0 0.0
  %1289 = vmatpush1.msra.mxu0 %v1282
  %1290 = vmatprep.subr.mxu0 0.0
  %1291 = vmatpush1.msra.mxu0 %v1281
  %1292 = vmatprep.subr.mxu0 0.0
  %1293 = vmatpush1.msra.mxu0 %v1280
  %1294 = vmatprep.subr.mxu0 0.0
  %1295 = vmatpush1.msra.mxu0 %v1279
  %1296 = vmatprep.subr.mxu0 0.0
  %1297 = vmatpush1.msra.mxu0 %v1278
  %1298 = vmatprep.subr.mxu0 0.0
  %1299 = vmatpush1.msra.mxu0 %v1277
  %1300 = vmatprep.subr.mxu0 0.0
  %1301 = vmatpush1.msra.mxu0 %v1276
  %1302 = vmatprep.subr.mxu0 0.0
  %1303 = vmatpush1.msra.mxu0 %v1275
  %1304 = vmatprep.subr.mxu0 0.0
  %1305 = vmatpush1.msra.mxu0 %v1274
  %1306 = vmatprep.subr.mxu0 0.0
  %1307 = vmatpush1.msra.mxu0 %v1273
  %1308 = vmatprep.subr.mxu0 0.0
  %1309 = vmatpush1.msra.mxu0 %v1272
  %1310 = vmatprep.subr.mxu0 0.0
  %1311 = vmatpush1.msra.mxu0 %v1271
  %1312 = vmatprep.subr.mxu0 0.0
  %1313 = vmatpush1.msra.mxu0 %v1270
  %1314 = vmatprep.subr.mxu0 0.0
  %1315 = vmatpush1.msra.mxu0 %v1269
  %1316 = vmatprep.subr.mxu0 0.0
  %1317 = vmatpush1.msra.mxu0 %v1268
  %1318 = vmatprep.subr.mxu0 0.0
  %1319 = vmatpush1.msra.mxu0 %v1267
  %1320 = vmatprep.subr.mxu0 0.0
  %1321 = vmatpush2.msra.mxu0 0.0
  %1322 = vmatprep.subr.mxu0 0.0
  %1323 = vmatpush2.msra.mxu0 0.0
  %1324 = vmatprep.subr.mxu0 0.0
  %1325 = vmatpush2.msra.mxu0 0.0
  %1326 = vmatprep.subr.mxu0 0.0
  %1327 = vmatpush2.msra.mxu0 0.0
  %1328 = vmatprep.subr.mxu0 0.0
  %1329 = vmatpush2.msra.mxu0 0.0
  %1330 = vmatprep.subr.mxu0 0.0
  %1331 = vmatpush2.msra.mxu0 0.0
  %1332 = vmatprep.subr.mxu0 0.0
  %1333 = vmatpush2.msra.mxu0 0.0
  %1334 = vmatprep.subr.mxu0 0.0
  %1335 = vmatpush2.msra.mxu0 0.0
  %1336 = vmatprep.subr.mxu0 0.0
  %1337 = vmatpush2.msra.mxu0 0.0
  %1338 = vmatprep.subr.mxu0 0.0
  %1339 = vmatpush2.msra.mxu0 0.0
  %1340 = vmatprep.subr.mxu0 0.0
  %1341 = vmatpush2.msra.mxu0 0.0
  %1342 = vmatprep.subr.mxu0 0.0
  %1343 = vmatpush2.msra.mxu0 0.0
  %1344 = vmatprep.subr.mxu0 0.0
  %1345 = vmatpush2.msra.mxu0 0.0
  %1346 = vmatprep.subr.mxu0 0.0
  %1347 = vmatpush2.msra.mxu0 0.0
  %1348 = vmatprep.subr.mxu0 0.0
  %1349 = vmatpush2.msra.mxu0 0.0
  %1350 = vmatprep.subr.mxu0 0.0
  %1351 = vmatpush2.msra.mxu0 0.0
  %1352 = vmatprep.mubr.f32.mxu0 0.0
  %1353 = vmatmul.mubr.f32.gmra.mxu0 %v1286
  %v1354 = vpop.f32.mrf.mxu0
  %v1355 = vadd.f32 %v1287, %v1354
  %v1356 = vpop.f32.mrf.mxu0
  %1357 = vdwg.mxu0
  %1358 = vst [vmem:[%s7] sm:$0x1] %v1355
  // Predicated region
  $region30: #{critic_forward.1} parent=0 // pred_check
    _
  $region31: #{critic_forward.1} parent=0 // pred_check_branch
    %1360 = sbr.rel (0) target = $region33
  $region32: #{critic_forward.1} parent=0 // pred_region
    _
  $region33: #{critic_forward.1} parent=0 // pred_fallthru
    _
  // Predicated region
  $region34: #{critic_forward.1} parent=0 // pred_check
    _
  $region35: #{critic_forward.1} parent=0 // pred_check_branch
    %1362 = sbr.rel (0) target = $region37
  $region36: #{critic_forward.1} parent=0 // pred_region
    _
  $region37: #{critic_forward.1} parent=0 // pred_fallthru
    _

</llo_original>
